<compile_context>
chip_gen: v6e
topology: v6e:2x2x1
jax: 0.10.0
libtpu: 0.0.40
codegen_flags: <defaults>
</compile_context>

<pallas_src>
import jax
import jax.numpy as jnp
from jax.experimental import pallas as pl
from jax.experimental.pallas import tpu as pltpu


def _mol_gdl_kernel(adj_ref, x_ref, pool_ref,
                    wmp_ref, bmp_ref,
                    w1_ref, b1_ref,
                    w2_ref, b2_ref,
                    out_ref):
    # One grid step == tb molecules fused as one block-diagonal graph.
    a = adj_ref[...]                    # (tb*N, tb*N) bf16 block-diagonal adjacency
    x = x_ref[...]                      # (tb*N, F)    bf16 node features
    wmp = wmp_ref[...]                  # (F, H)       bf16
    F, H = wmp.shape

    # ---- MessagePassing:  H = relu(A @ X @ W_mp + b_mp) ----
    # Associativity picked at trace time: contract the adjacency against min(F, H) cols.
    if H < F:
        xw = jnp.dot(x, wmp, preferred_element_type=jnp.float32)        # (tb*N, H) f32
        h = jnp.dot(a, xw.astype(jnp.bfloat16),
                    preferred_element_type=jnp.float32)                 # (tb*N, H) f32
    else:
        ax = jnp.dot(a, x, preferred_element_type=jnp.float32)          # (tb*N, F) f32
        h = jnp.dot(ax.astype(jnp.bfloat16), wmp,
                    preferred_element_type=jnp.float32)                 # (tb*N, H) f32
    h = jnp.maximum(h + bmp_ref[...], 0.0)                              # f32 epilogue

    # ---- GNN:  G = relu(H @ W1 + b1) ----
    g = jnp.dot(h.astype(jnp.bfloat16), w1_ref[...],
                preferred_element_type=jnp.float32)
    g = jnp.maximum(g + b1_ref[...], 0.0)                               # (tb*N, H) f32

    # ---- per-molecule sum pooling as one MXU matmul (1/N folded into W2) ----
    pooled = jnp.dot(pool_ref[...], g.astype(jnp.bfloat16),
                     preferred_element_type=jnp.float32)                # (tb, H) f32

    # ---- readout head: W2 is pre-scaled by 1/N and zero-padded to 128 lanes ----
    y = jnp.dot(pooled.astype(jnp.bfloat16), w2_ref[...],
                preferred_element_type=jnp.float32) + b2_ref[...]       # (tb, CP) f32

    out_ref[...] = y.astype(out_ref.dtype)                              # unmasked vst


def _pick_tb(B, N, F):
    """Molecules per grid step, sized to the TPU generation."""
    try:
        kind = jax.devices()[0].device_kind.lower()
    except Exception:
        kind = ""
    two_tc = ("v7" in kind) or ("7x" in kind)        # v7x: 2 TensorCores per chip
    k_cap = 128 if "v5" in kind else 256             # MXU: 4x128^2 (v5e) vs 2x256^2
    vmem_budget = 16 * 1024 * 1024                   # half of the 32 MiB scoped limit

    def ok(tb):
        n_steps = B // tb
        if two_tc and n_steps < 2 and tb > 1:
            return False                              # keep both v7x TCs busy
        if tb * N > k_cap:
            return False                              # one MXU pass per contraction
        if n_steps > 1 and (tb * N) % 16 != 0:
            return False                              # bf16 sublane-aligned blocks
        # streamed, double-buffered bf16 bytes: block-diag adjacency + features
        stream = 2 * 2 * ((tb * N) * (tb * N) + (tb * N) * F)
        return stream <= vmem_budget

    for tb in range(B, 0, -1):
        if B % tb == 0 and ok(tb):
            return tb
    return 1


def mol_gdl_forward(adj, features, params, *, tb=None):
    """adj: (B, N, N) f32, features: (B, N, F) f32 -> (B, C) f32."""
    B, N, F = features.shape
    wmp, bmp, w1, b1, w2, b2 = params
    H = wmp.shape[1]
    C = w2.shape[1]
    CP = ((C + 127) // 128) * 128                     # lane-dense padded readout width

    if tb is None:
        tb = _pick_tb(B, N, F)
    assert B % tb == 0, f"batch {B} must be divisible by tile size {tb}"
    num_tiles = B // tb

    # Streamed operands, pre-cast to bf16.  Block-diagonal adjacency slab per tile:
    # one fused (tb*N, tb*N) matmul per step replaces tb tiny (N, N) matmuls.
    # (Built once on the XLA side; O(B * tb * N^2) bf16 bytes.)
    adj_b = adj.astype(jnp.bfloat16).reshape(num_tiles, tb, N, N)
    eye_tb = jnp.eye(tb, dtype=jnp.bfloat16)
    adj_bd = (adj_b[:, :, :, None, :] * eye_tb[None, :, None, :, None]
              ).reshape(num_tiles * tb * N, tb * N)
    x_flat = features.astype(jnp.bfloat16).reshape(B * N, F)

    # 0/1 sum-pooling matrix (grid-invariant VMEM resident); 1/N folded into W2.
    pool = jnp.repeat(jnp.eye(tb, dtype=jnp.float32), N, axis=1).astype(jnp.bfloat16)

    # Weights: bf16 for the MXU; readout weight pre-scaled by 1/N (exact, in f32)
    # and zero-padded to CP lanes so the output store is a full unmasked vst.
    wmp_b = wmp.astype(jnp.bfloat16)
    w1_b = w1.astype(jnp.bfloat16)
    w2_p = jnp.zeros((H, CP), jnp.float32).at[:, :C].set(w2 / float(N)).astype(jnp.bfloat16)
    b2_p = jnp.zeros((1, CP), jnp.float32).at[:, :C].set(b2)

    # Grid-invariant operands: whole-array VMEM residents (no pipelining buffers).
    vmem_full = pl.BlockSpec(memory_space=pltpu.MemorySpace.VMEM)

    out_padded = pl.pallas_call(
        _mol_gdl_kernel,
        out_shape=jax.ShapeDtypeStruct((B, CP), jnp.float32),
        grid_spec=pltpu.PrefetchScalarGridSpec(
            num_scalar_prefetch=0,
            grid=(num_tiles,),
            in_specs=[
                pl.BlockSpec((tb * N, tb * N), lambda b: (b, 0)),   # block-diag adj tile (bf16)
                pl.BlockSpec((tb * N, F), lambda b: (b, 0)),        # feature tile (bf16)
                vmem_full,                                          # pool 0/1 (bf16)
                vmem_full,                                          # W_mp (bf16)
                vmem_full,                                          # b_mp (f32)
                vmem_full,                                          # W1   (bf16)
                vmem_full,                                          # b1   (f32)
                vmem_full,                                          # W2/N (bf16, lane-padded)
                vmem_full,                                          # b2   (f32, lane-padded)
            ],
            out_specs=pl.BlockSpec((tb, CP), lambda b: (b, 0)),
        ),
        compiler_params=pltpu.CompilerParams(
            dimension_semantics=("parallel",),
            vmem_limit_bytes=32 * 1024 * 1024),
    )(adj_bd, x_flat, pool, wmp_b, bmp, w1_b, b1, w2_p, b2_p)

    return out_padded[:, :C]


def init_params(key, F, H, C):
    ks = jax.random.split(key, 6)
    wmp = 0.1 * jax.random.normal(ks[0], (F, H), jnp.float32)
    bmp = 0.1 * jax.random.normal(ks[1], (1, H), jnp.float32)
    w1 = 0.1 * jax.random.normal(ks[2], (H, H), jnp.float32)
    b1 = 0.1 * jax.random.normal(ks[3], (1, H), jnp.float32)
    w2 = 0.1 * jax.random.normal(ks[4], (H, C), jnp.float32)
    b2 = 0.1 * jax.random.normal(ks[5], (1, C), jnp.float32)
    return (wmp, bmp, w1, b1, w2, b2)


def reference_forward(adj, x, params, *, bf16_dots=True):
    """Plain-JAX reference. bf16_dots=True mirrors the kernel numerics
    (bf16 dot operands, f32 accumulation, sum-pool with 1/N folded into W2);
    False is pure f32 with a true mean pool."""
    wmp, bmp, w1, b1, w2, b2 = params
    F, H = wmp.shape
    N = x.shape[1]
    cast = (lambda t: t.astype(jnp.bfloat16)) if bf16_dots else (lambda t: t)

    if H < F:
        xw = jnp.einsum('bnf,fh->bnh', cast(x), cast(wmp),
                        preferred_element_type=jnp.float32)
        h = jnp.einsum('bnm,bmh->bnh', cast(adj), cast(xw),
                       preferred_element_type=jnp.float32)
    else:
        ax = jnp.einsum('bnm,bmf->bnf', cast(adj), cast(x),
                        preferred_element_type=jnp.float32)
        h = jnp.einsum('bnf,fh->bnh', cast(ax), cast(wmp),
                       preferred_element_type=jnp.float32)
    h = jnp.maximum(h + bmp, 0.0)
    g = jnp.maximum(jnp.einsum('bnh,hk->bnk', cast(h), cast(w1),
                               preferred_element_type=jnp.float32) + b1, 0.0)
    if bf16_dots:
        pooled = jnp.sum(cast(g).astype(jnp.float32), axis=1)          # sum pool
        y = jnp.einsum('bh,hc->bc', cast(pooled), cast(w2 / float(N)),
                       preferred_element_type=jnp.float32) + b2        # 1/N in W2
    else:
        pooled = jnp.mean(g, axis=1)
        y = jnp.einsum('bh,hc->bc', pooled, w2,
                       preferred_element_type=jnp.float32) + b2
    return y


if __name__ == "__main__":
    B, N, F, H, C = 16, 8, 16, 32, 8

    key = jax.random.PRNGKey(0)
    k_x, k_a, k_p = jax.random.split(key, 3)

    # Node features (what MessagePassing.read_feature would have loaded).
    x = jax.random.normal(k_x, (B, N, F), jnp.float32)

    # Adjacency (what MessagePassing.read_adj would have loaded): symmetric,
    # self-loops added, row-normalized.
    raw = (jax.random.uniform(k_a, (B, N, N)) > 0.5).astype(jnp.float32)
    adj = jnp.maximum(raw, jnp.transpose(raw, (0, 2, 1)))
    adj = adj + jnp.eye(N, dtype=jnp.float32)[None]
    adj = adj / jnp.sum(adj, axis=-1, keepdims=True)

    params = init_params(k_p, F, H, C)

    out = mol_gdl_forward(adj, x, params)     # tb auto-sized for the TPU generation
    out = jax.block_until_ready(out)
    assert out.shape == (B, C)

    ref_bf16 = reference_forward(adj, x, params, bf16_dots=True)
    ref_f32 = reference_forward(adj, x, params, bf16_dots=False)
    assert jnp.allclose(out, ref_bf16, atol=5e-3, rtol=1e-2), \
        "mismatch vs precision-matched reference"
    assert jnp.allclose(out, ref_f32, atol=5e-2, rtol=5e-2), \
        "mismatch vs f32 reference"

    print("KERNEL_OK")
</pallas_src>

<mosaic_0001>
module attributes {stable_mosaic.version = 11 : i64} {
  func.func @_mol_gdl_kernel(%arg0: i32, %arg1: memref<128x128xbf16, #tpu.memory_space<vmem>>, %arg2: memref<128x16xbf16, #tpu.memory_space<vmem>>, %arg3: memref<16x128xbf16, #tpu.memory_space<vmem>>, %arg4: memref<16x32xbf16, #tpu.memory_space<vmem>>, %arg5: memref<1x32xf32, #tpu.memory_space<vmem>>, %arg6: memref<32x32xbf16, #tpu.memory_space<vmem>>, %arg7: memref<1x32xf32, #tpu.memory_space<vmem>>, %arg8: memref<32x128xbf16, #tpu.memory_space<vmem>>, %arg9: memref<1x128xf32, #tpu.memory_space<vmem>>, %arg10: memref<16x128xf32, #tpu.memory_space<vmem>>) attributes {dimension_semantics = [#tpu.dimension_semantics<parallel>], iteration_bounds = array<i64: 1>, scalar_prefetch = 0 : i64, scratch_operands = 0 : i64, tpu.core_type = #tpu.core_type<tc>, window_params = [{transform_indices = @transform_0, window_bounds = array<i64: 128, 128>}, {transform_indices = @transform_1, window_bounds = array<i64: 128, 16>}, {pipeline_mode = #tpu.pipeline_mode<synchronous>, transform_indices = @transform_2, window_bounds = array<i64: 16, 128>}, {pipeline_mode = #tpu.pipeline_mode<synchronous>, transform_indices = @transform_3, window_bounds = array<i64: 16, 32>}, {pipeline_mode = #tpu.pipeline_mode<synchronous>, transform_indices = @transform_4, window_bounds = array<i64: 1, 32>}, {pipeline_mode = #tpu.pipeline_mode<synchronous>, transform_indices = @transform_5, window_bounds = array<i64: 32, 32>}, {pipeline_mode = #tpu.pipeline_mode<synchronous>, transform_indices = @transform_6, window_bounds = array<i64: 1, 32>}, {pipeline_mode = #tpu.pipeline_mode<synchronous>, transform_indices = @transform_7, window_bounds = array<i64: 32, 128>}, {pipeline_mode = #tpu.pipeline_mode<synchronous>, transform_indices = @transform_8, window_bounds = array<i64: 1, 128>}, {transform_indices = @transform_9, window_bounds = array<i64: 16, 128>}]} {
    %c0 = arith.constant 0 : index
    %c0_0 = arith.constant 0 : index
    %0 = vector.load %arg1[%c0, %c0_0] : memref<128x128xbf16, #tpu.memory_space<vmem>>, vector<128x128xbf16>
    %c0_1 = arith.constant 0 : index
    %c0_2 = arith.constant 0 : index
    %1 = vector.load %arg2[%c0_1, %c0_2] : memref<128x16xbf16, #tpu.memory_space<vmem>>, vector<128x16xbf16>
    %c0_3 = arith.constant 0 : index
    %c0_4 = arith.constant 0 : index
    %2 = vector.load %arg4[%c0_3, %c0_4] : memref<16x32xbf16, #tpu.memory_space<vmem>>, vector<16x32xbf16>
    %cst = arith.constant dense<0.000000e+00> : vector<128x16xf32>
    %3 = tpu.matmul %0, %1, %cst {dimension_numbers = #tpu.dot_dimension_numbers<[1], [0], [0], [1], [0, 0, 1, 1], [], []>} : vector<128x128xbf16>, vector<128x16xbf16>, vector<128x16xf32> -> vector<128x16xf32>
    %4 = arith.truncf %3 : vector<128x16xf32> to vector<128x16xbf16>
    %cst_5 = arith.constant dense<0.000000e+00> : vector<128x32xf32>
    %5 = tpu.matmul %4, %2, %cst_5 {dimension_numbers = #tpu.dot_dimension_numbers<[1], [0], [0], [1], [0, 0, 1, 1], [], []>} : vector<128x16xbf16>, vector<16x32xbf16>, vector<128x32xf32> -> vector<128x32xf32>
    %c0_6 = arith.constant 0 : index
    %c0_7 = arith.constant 0 : index
    %6 = vector.load %arg5[%c0_6, %c0_7] : memref<1x32xf32, #tpu.memory_space<vmem>>, vector<1x32xf32>
    %7 = vector.broadcast %6 : vector<1x32xf32> to vector<128x32xf32>
    %8 = arith.addf %5, %7 : vector<128x32xf32>
    %cst_8 = arith.constant 0.000000e+00 : f32
    %9 = vector.broadcast %cst_8 : f32 to vector<128x32xf32>
    %10 = arith.maximumf %8, %9 : vector<128x32xf32>
    %11 = arith.truncf %10 : vector<128x32xf32> to vector<128x32xbf16>
    %c0_9 = arith.constant 0 : index
    %c0_10 = arith.constant 0 : index
    %12 = vector.load %arg6[%c0_9, %c0_10] : memref<32x32xbf16, #tpu.memory_space<vmem>>, vector<32x32xbf16>
    %cst_11 = arith.constant dense<0.000000e+00> : vector<128x32xf32>
    %13 = tpu.matmul %11, %12, %cst_11 {dimension_numbers = #tpu.dot_dimension_numbers<[1], [0], [0], [1], [0, 0, 1, 1], [], []>} : vector<128x32xbf16>, vector<32x32xbf16>, vector<128x32xf32> -> vector<128x32xf32>
    %c0_12 = arith.constant 0 : index
    %c0_13 = arith.constant 0 : index
    %14 = vector.load %arg7[%c0_12, %c0_13] : memref<1x32xf32, #tpu.memory_space<vmem>>, vector<1x32xf32>
    %15 = vector.broadcast %14 : vector<1x32xf32> to vector<128x32xf32>
    %16 = arith.addf %13, %15 : vector<128x32xf32>
    %cst_14 = arith.constant 0.000000e+00 : f32
    %17 = vector.broadcast %cst_14 : f32 to vector<128x32xf32>
    %18 = arith.maximumf %16, %17 : vector<128x32xf32>
    %c0_15 = arith.constant 0 : index
    %c0_16 = arith.constant 0 : index
    %19 = vector.load %arg3[%c0_15, %c0_16] : memref<16x128xbf16, #tpu.memory_space<vmem>>, vector<16x128xbf16>
    %20 = arith.truncf %18 : vector<128x32xf32> to vector<128x32xbf16>
    %cst_17 = arith.constant dense<0.000000e+00> : vector<16x32xf32>
    %21 = tpu.matmul %19, %20, %cst_17 {dimension_numbers = #tpu.dot_dimension_numbers<[1], [0], [0], [1], [0, 0, 1, 1], [], []>} : vector<16x128xbf16>, vector<128x32xbf16>, vector<16x32xf32> -> vector<16x32xf32>
    %22 = arith.truncf %21 : vector<16x32xf32> to vector<16x32xbf16>
    %c0_18 = arith.constant 0 : index
    %c0_19 = arith.constant 0 : index
    %23 = vector.load %arg8[%c0_18, %c0_19] : memref<32x128xbf16, #tpu.memory_space<vmem>>, vector<32x128xbf16>
    %cst_20 = arith.constant dense<0.000000e+00> : vector<16x128xf32>
    %24 = tpu.matmul %22, %23, %cst_20 {dimension_numbers = #tpu.dot_dimension_numbers<[1], [0], [0], [1], [0, 0, 1, 1], [], []>} : vector<16x32xbf16>, vector<32x128xbf16>, vector<16x128xf32> -> vector<16x128xf32>
    %c0_21 = arith.constant 0 : index
    %c0_22 = arith.constant 0 : index
    %25 = vector.load %arg9[%c0_21, %c0_22] : memref<1x128xf32, #tpu.memory_space<vmem>>, vector<1x128xf32>
    %26 = vector.broadcast %25 : vector<1x128xf32> to vector<16x128xf32>
    %27 = arith.addf %24, %26 : vector<16x128xf32>
    %c0_23 = arith.constant 0 : index
    %c0_24 = arith.constant 0 : index
    %28 = vector.load %arg10[%c0_23, %c0_24] : memref<16x128xf32, #tpu.memory_space<vmem>>, vector<16x128xf32>
    tpu.vector_store %arg10[%c0_23, %c0_24], %27 {strides = array<i32>} : memref<16x128xf32, #tpu.memory_space<vmem>>, vector<16x128xf32>,
    return
  }
  func.func @transform_0(%arg0: i32) -> (i32, i32) {
    %c0_i32 = arith.constant 0 : i32
    %c0_i32_0 = arith.constant 0 : i32
    return %arg0, %c0_i32 : i32, i32
  }
  func.func @transform_1(%arg0: i32) -> (i32, i32) {
    %c0_i32 = arith.constant 0 : i32
    %c0_i32_0 = arith.constant 0 : i32
    return %arg0, %c0_i32 : i32, i32
  }
  func.func @transform_2(%arg0: i32) -> (i32, i32) {
    %c0_i32 = arith.constant 0 : i32
    %c0_i32_0 = arith.constant 0 : i32
    %c0_i32_1 = arith.constant 0 : i32
    return %c0_i32, %c0_i32_0 : i32, i32
  }
  func.func @transform_3(%arg0: i32) -> (i32, i32) {
    %c0_i32 = arith.constant 0 : i32
    %c0_i32_0 = arith.constant 0 : i32
    %c0_i32_1 = arith.constant 0 : i32
    return %c0_i32, %c0_i32_0 : i32, i32
  }
  func.func @transform_4(%arg0: i32) -> (i32, i32) {
    %c0_i32 = arith.constant 0 : i32
    %c0_i32_0 = arith.constant 0 : i32
    %c0_i32_1 = arith.constant 0 : i32
    return %c0_i32, %c0_i32_0 : i32, i32
  }
  func.func @transform_5(%arg0: i32) -> (i32, i32) {
    %c0_i32 = arith.constant 0 : i32
    %c0_i32_0 = arith.constant 0 : i32
    %c0_i32_1 = arith.constant 0 : i32
    return %c0_i32, %c0_i32_0 : i32, i32
  }
  func.func @transform_6(%arg0: i32) -> (i32, i32) {
    %c0_i32 = arith.constant 0 : i32
    %c0_i32_0 = arith.constant 0 : i32
    %c0_i32_1 = arith.constant 0 : i32
    return %c0_i32, %c0_i32_0 : i32, i32
  }
  func.func @transform_7(%arg0: i32) -> (i32, i32) {
    %c0_i32 = arith.constant 0 : i32
    %c0_i32_0 = arith.constant 0 : i32
    %c0_i32_1 = arith.constant 0 : i32
    return %c0_i32, %c0_i32_0 : i32, i32
  }
  func.func @transform_8(%arg0: i32) -> (i32, i32) {
    %c0_i32 = arith.constant 0 : i32
    %c0_i32_0 = arith.constant 0 : i32
    %c0_i32_1 = arith.constant 0 : i32
    return %c0_i32, %c0_i32_0 : i32, i32
  }
  func.func @transform_9(%arg0: i32) -> (i32, i32) {
    %c0_i32 = arith.constant 0 : i32
    %c0_i32_0 = arith.constant 0 : i32
    return %arg0, %c0_i32 : i32, i32
  }
}

</mosaic_0001>

<llo_original>
// kernel: tpu_custom_call.1
$region0: #{tpu_custom_call.1}
  #allocation0 [shape = 'u32[]', space=smem, size = 0x4, offset = 0x4, fixed_abs, tag = 'smem constant byte address 0x4 - core index']
  #allocation1 [shape = 'u32[144,128]{1,0:T(1,128)}', space=vmem, size = 0x12000, scoped, tag = 'internal scratch']
  %s0 = inlined_call_operand.vmem [shape: bf16[128,128], index: 0, kind: input, shape index: {}]
  %s1 = inlined_call_operand.vmem [shape: bf16[128,16], index: 1, kind: input, shape index: {}]
  %s2 = inlined_call_operand.hbm [shape: bf16[16,128], index: 2, kind: input, shape index: {}]
  %s3 = inlined_call_operand.hbm [shape: bf16[16,32], index: 3, kind: input, shape index: {}]
  %s4 = inlined_call_operand.vmem [shape: f32[1,32], index: 4, kind: input, shape index: {}]
  %s5 = inlined_call_operand.vmem [shape: bf16[32,32], index: 5, kind: input, shape index: {}]
  %s6 = inlined_call_operand.vmem [shape: f32[1,32], index: 6, kind: input, shape index: {}]
  %s7 = inlined_call_operand.hbm [shape: bf16[32,128], index: 7, kind: input, shape index: {}]
  %s8 = inlined_call_operand.vmem [shape: f32[1,128], index: 8, kind: input, shape index: {}]
  %s9 = inlined_call_operand.hbm [shape: f32[16,128], index: 9, kind: output, shape index: {}]
  %s10 = sld [smem:[#allocation0]]
  $region58: #{tpu_custom_call.1} parent=0
    _
  %s12 = ssub.s32 1, %s10
  %s13 = scalar_select 0, %s12, %s10
  $region1: #{tpu_custom_call.1} parent=0
    #allocation2 [shape = 'u8[4096]{0}', space=vmem, size = 0x1000, scoped, tag = 'input window, operand 2, single buffered']
    #allocation3 [shape = 's32[1]{0}', space=sflag, size = 0x4, scoped, tag = 'scoped memory for tpu_custom_call.1']
    #allocation4 [shape = 's32[1]{0}', space=sflag, size = 0x4, scoped, tag = 'scoped memory for tpu_custom_call.1']
    #allocation5 [shape = 'u8[4096]{0}', space=vmem, size = 0x1000, scoped, tag = 'input window, operand 3, single buffered']
    #allocation6 [shape = 's32[1]{0}', space=sflag, size = 0x4, scoped, tag = 'scoped memory for tpu_custom_call.1']
    #allocation7 [shape = 'u8[8192]{0}', space=vmem, size = 0x2000, scoped, tag = 'input window, operand 7, single buffered']
    #allocation8 [shape = 'u8[8192]{0}', space=vmem, size = 0x2000, scoped, tag = 'output window, operand 0, single buffered']
    %14 = vsyncpa [#allocation3], 0
    %15 = vsyncpa [#allocation6], 0
    %16 = vsyncpa [#allocation4], 0
    // Predicated region
    $region2: #{tpu_custom_call.1} parent=1 // pred_check
      _
    $region3: #{tpu_custom_call.1} parent=1 // pred_check_branch
      %18 = sbr.rel (0) target = $region5
    $region4: #{tpu_custom_call.1} parent=1 // pred_region
      _
    $region5: #{tpu_custom_call.1} parent=1 // pred_fallthru
      _
    // Predicated region
    $region6: #{tpu_custom_call.1} parent=1 // pred_check
      _
    $region7: #{tpu_custom_call.1} parent=1 // pred_check_branch
      %20 = sbr.rel (0) target = $region9
    $region8: #{tpu_custom_call.1} parent=1 // pred_region
      _
    $region9: #{tpu_custom_call.1} parent=1 // pred_fallthru
      _
    // Predicated region
    $region10: #{tpu_custom_call.1} parent=1 // pred_check
      _
    $region11: #{tpu_custom_call.1} parent=1 // pred_check_branch
      %22 = sbr.rel (0) target = $region13
    $region12: #{tpu_custom_call.1} parent=1 // pred_region
      %s24 = ssub.s32 128, 128
      %25 = vsyncadd [#allocation3], %s24
      %s26 = sshll.u32 [#allocation2], 4
      %s27 = int_to_ptr.vmem [resolvable:$true] %s26
      %32 = dma.hbm_to_vmem [thread:$0]  %s2, 128, %s27, [#allocation3], 64, 64, 4
    $region13: #{tpu_custom_call.1} parent=1 // pred_fallthru
      _
    // Predicated region
    $region14: #{tpu_custom_call.1} parent=1 // pred_check
      _
    $region15: #{tpu_custom_call.1} parent=1 // pred_check_branch
      %34 = sbr.rel (0) target = $region17
    $region16: #{tpu_custom_call.1} parent=1 // pred_region
      %s36 = ssub.s32 128, 128
      %37 = vsyncadd [#allocation6], %s36
      %s38 = sshll.u32 [#allocation5], 4
      %s39 = int_to_ptr.vmem [resolvable:$true] %s38
      %44 = dma.hbm_to_vmem [thread:$0]  %s3, 128, %s39, [#allocation6], 64, 64, 4
    $region17: #{tpu_custom_call.1} parent=1 // pred_fallthru
      _
    // Predicated region
    $region18: #{tpu_custom_call.1} parent=1 // pred_check
      _
    $region19: #{tpu_custom_call.1} parent=1 // pred_check_branch
      %46 = sbr.rel (0) target = $region21
    $region20: #{tpu_custom_call.1} parent=1 // pred_region
      _
    $region21: #{tpu_custom_call.1} parent=1 // pred_fallthru
      _
    // Predicated region
    $region22: #{tpu_custom_call.1} parent=1 // pred_check
      _
    $region23: #{tpu_custom_call.1} parent=1 // pred_check_branch
      %48 = sbr.rel (0) target = $region25
    $region24: #{tpu_custom_call.1} parent=1 // pred_region
      _
    $region25: #{tpu_custom_call.1} parent=1 // pred_fallthru
      _
    // Predicated region
    $region26: #{tpu_custom_call.1} parent=1 // pred_check
      _
    $region27: #{tpu_custom_call.1} parent=1 // pred_check_branch
      %50 = sbr.rel (0) target = $region29
    $region28: #{tpu_custom_call.1} parent=1 // pred_region
      _
    $region29: #{tpu_custom_call.1} parent=1 // pred_fallthru
      _
    // Predicated region
    $region30: #{tpu_custom_call.1} parent=1 // pred_check
      _
    $region31: #{tpu_custom_call.1} parent=1 // pred_check_branch
      %52 = sbr.rel (0) target = $region33
    $region32: #{tpu_custom_call.1} parent=1 // pred_region
      %s54 = ssub.s32 256, 256
      %55 = vsyncadd [#allocation6], %s54
      %s56 = sshll.u32 [#allocation7], 4
      %s57 = int_to_ptr.vmem [resolvable:$true] %s56
      %62 = dma.hbm_to_vmem [thread:$0]  %s7, 256, %s57, [#allocation6], 64, 64, 4
    $region33: #{tpu_custom_call.1} parent=1 // pred_fallthru
      _
    // Predicated region
    $region34: #{tpu_custom_call.1} parent=1 // pred_check
      _
    $region35: #{tpu_custom_call.1} parent=1 // pred_check_branch
      %64 = sbr.rel (0) target = $region37
    $region36: #{tpu_custom_call.1} parent=1 // pred_region
      _
    $region37: #{tpu_custom_call.1} parent=1 // pred_fallthru
      _
    // Predicated region
    $region38: #{tpu_custom_call.1} parent=1 // pred_check
      _
    $region39: #{tpu_custom_call.1} parent=1 // pred_check_branch
      %66 = sbr.rel (0) target = $region41
    $region40: #{tpu_custom_call.1} parent=1 // pred_region
      %67 = dma.done [#allocation3], 128
    $region41: #{tpu_custom_call.1} parent=1 // pred_fallthru
      _
    // Predicated region
    $region42: #{tpu_custom_call.1} parent=1 // pred_check
      _
    $region43: #{tpu_custom_call.1} parent=1 // pred_check_branch
      %69 = sbr.rel (0) target = $region45
    $region44: #{tpu_custom_call.1} parent=1 // pred_region
      %70 = dma.done [#allocation6], 128
    $region45: #{tpu_custom_call.1} parent=1 // pred_fallthru
      _
    // Predicated region
    $region46: #{tpu_custom_call.1} parent=1 // pred_check
      _
    $region47: #{tpu_custom_call.1} parent=1 // pred_check_branch
      %72 = sbr.rel (0) target = $region49
    $region48: #{tpu_custom_call.1} parent=1 // pred_region
      %73 = dma.done [#allocation6], 256
    $region49: #{tpu_custom_call.1} parent=1 // pred_fallthru
      _
    %v75 = vld [vmem:[%s0] sm:$0xf]
    %v76 = vld [vmem:[%s0 + $0x4] sm:$0xf]
    %v77 = vld [vmem:[%s0 + $0x8] sm:$0xf]
    %v78 = vld [vmem:[%s0 + $0xc] sm:$0xf]
    %v79 = vld [vmem:[%s0 + $0x10] sm:$0xf]
    %v80 = vld [vmem:[%s0 + $0x14] sm:$0xf]
    %v81 = vld [vmem:[%s0 + $0x18] sm:$0xf]
    %v82 = vld [vmem:[%s0 + $0x1c] sm:$0xf]
    %v83 = vld [vmem:[%s0 + $0x20] sm:$0xf]
    %v84 = vld [vmem:[%s0 + $0x24] sm:$0xf]
    %v85 = vld [vmem:[%s0 + $0x28] sm:$0xf]
    %v86 = vld [vmem:[%s0 + $0x2c] sm:$0xf]
    %v87 = vld [vmem:[%s0 + $0x30] sm:$0xf]
    %v88 = vld [vmem:[%s0 + $0x34] sm:$0xf]
    %v89 = vld [vmem:[%s0 + $0x38] sm:$0xf]
    %v90 = vld [vmem:[%s0 + $0x3c] sm:$0xf]
    %v91 = vld [vmem:[%s1] sm:$0xf]
    %v92 = vld [vmem:[%s1 + $0x4] sm:$0xf]
    %v93 = vld [vmem:[%s1 + $0x8] sm:$0xf]
    %v94 = vld [vmem:[%s1 + $0xc] sm:$0xf]
    %v95 = vld [vmem:[%s1 + $0x10] sm:$0xf]
    %v96 = vld [vmem:[%s1 + $0x14] sm:$0xf]
    %v97 = vld [vmem:[%s1 + $0x18] sm:$0xf]
    %v98 = vld [vmem:[%s1 + $0x1c] sm:$0xf]
    %v99 = vld [vmem:[%s1 + $0x20] sm:$0xf]
    %v100 = vld [vmem:[%s1 + $0x24] sm:$0xf]
    %v101 = vld [vmem:[%s1 + $0x28] sm:$0xf]
    %v102 = vld [vmem:[%s1 + $0x2c] sm:$0xf]
    %v103 = vld [vmem:[%s1 + $0x30] sm:$0xf]
    %v104 = vld [vmem:[%s1 + $0x34] sm:$0xf]
    %v105 = vld [vmem:[%s1 + $0x38] sm:$0xf]
    %v106 = vld [vmem:[%s1 + $0x3c] sm:$0xf]
    %v107 = vld [vmem:[#allocation5] sm:$0xf]
    %v108 = vld [vmem:[#allocation5 + $0x4] sm:$0xf]
    %v125 = vunpack.c.l.b16 %v75
    %v126 = vunpack.c.l.b16 %v76
    %v127 = vunpack.c.l.b16 %v77
    %v128 = vunpack.c.l.b16 %v78
    %v129 = vunpack.c.l.b16 %v79
    %v130 = vunpack.c.l.b16 %v80
    %v131 = vunpack.c.l.b16 %v81
    %v132 = vunpack.c.l.b16 %v82
    %v133 = vunpack.c.l.b16 %v83
    %v134 = vunpack.c.l.b16 %v84
    %v135 = vunpack.c.l.b16 %v85
    %v136 = vunpack.c.l.b16 %v86
    %v137 = vunpack.c.l.b16 %v87
    %v138 = vunpack.c.l.b16 %v88
    %v139 = vunpack.c.l.b16 %v89
    %v140 = vunpack.c.l.b16 %v90
    %v141 = vpack.c.b16 %v126, %v125
    %v142 = vpack.c.b16 %v128, %v127
    %v143 = vpack.c.b16 %v130, %v129
    %v144 = vpack.c.b16 %v132, %v131
    %v145 = vpack.c.b16 %v134, %v133
    %v146 = vpack.c.b16 %v136, %v135
    %v147 = vpack.c.b16 %v138, %v137
    %v148 = vpack.c.b16 %v140, %v139
    %v173 = vunpack.c.l.b16 %v91
    %v174 = vunpack.c.l.b16 %v92
    %v175 = vunpack.c.l.b16 %v93
    %v176 = vunpack.c.l.b16 %v94
    %v177 = vunpack.c.l.b16 %v95
    %v178 = vunpack.c.l.b16 %v96
    %v179 = vunpack.c.l.b16 %v97
    %v180 = vunpack.c.l.b16 %v98
    %v181 = vunpack.c.l.b16 %v99
    %v182 = vunpack.c.l.b16 %v100
    %v183 = vunpack.c.l.b16 %v101
    %v184 = vunpack.c.l.b16 %v102
    %v185 = vunpack.c.l.b16 %v103
    %v186 = vunpack.c.l.b16 %v104
    %v187 = vunpack.c.l.b16 %v105
    %v188 = vunpack.c.l.b16 %v106
    %v189 = vpack.c.b16 %v174, %v173
    %v190 = vpack.c.b16 %v176, %v175
    %v191 = vpack.c.b16 %v178, %v177
    %v192 = vpack.c.b16 %v180, %v179
    %v193 = vpack.c.b16 %v182, %v181
    %v194 = vpack.c.b16 %v184, %v183
    %v195 = vpack.c.b16 %v186, %v185
    %v196 = vpack.c.b16 %v188, %v187
    %205 = vmatprep.subr.bf16.mxu0 0
    %206 = vmatpush1.bf16.msra.mxu0 %v196
    %207 = vmatprep.subr.bf16.mxu0 0
    %208 = vmatpush1.bf16.msra.mxu0 %v195
    %209 = vmatprep.subr.bf16.mxu0 0
    %210 = vmatpush1.bf16.msra.mxu0 %v194
    %211 = vmatprep.subr.bf16.mxu0 0
    %212 = vmatpush1.bf16.msra.mxu0 %v193
    %213 = vmatprep.subr.bf16.mxu0 0
    %214 = vmatpush1.bf16.msra.mxu0 %v192
    %215 = vmatprep.subr.bf16.mxu0 0
    %216 = vmatpush1.bf16.msra.mxu0 %v191
    %217 = vmatprep.subr.bf16.mxu0 0
    %218 = vmatpush1.bf16.msra.mxu0 %v190
    %219 = vmatprep.subr.bf16.mxu0 0
    %220 = vmatpush1.bf16.msra.mxu0 %v189
    %221 = vmatprep.subr.bf16.mxu0 0
    %222 = vmatpush2.bf16.msra.mxu0 0
    %223 = vmatprep.subr.bf16.mxu0 0
    %224 = vmatpush2.bf16.msra.mxu0 0
    %225 = vmatprep.subr.bf16.mxu0 0
    %226 = vmatpush2.bf16.msra.mxu0 0
    %227 = vmatprep.subr.bf16.mxu0 0
    %228 = vmatpush2.bf16.msra.mxu0 0
    %229 = vmatprep.subr.bf16.mxu0 0
    %230 = vmatpush2.bf16.msra.mxu0 0
    %231 = vmatprep.subr.bf16.mxu0 0
    %232 = vmatpush2.bf16.msra.mxu0 0
    %233 = vmatprep.subr.bf16.mxu0 0
    %234 = vmatpush2.bf16.msra.mxu0 0
    %235 = vmatprep.subr.bf16.mxu0 0
    %236 = vmatpush2.bf16.msra.mxu0 0
    %237 = vmatprep.mubr.bf16.mxu0 0
    %238 = vmatmul.mubr.bf16.gmra.mxu0 %v141
    %v239 = vpop.f32.mrf.mxu0
    %v240 = vadd.f32 0.0, %v239
    %v241 = vpop.f32.mrf.mxu0
    %v242 = vpop.f32.mrf.mxu0
    %v243 = vadd.f32 0.0, %v242
    %v244 = vpop.f32.mrf.mxu0
    %245 = vmatprep.mubr.bf16.mxu0 0
    %246 = vmatmul.mubr.bf16.gmra.mxu0 %v142
    %v247 = vpop.f32.mrf.mxu0
    %v248 = vadd.f32 0.0, %v247
    %v249 = vpop.f32.mrf.mxu0
    %v250 = vpop.f32.mrf.mxu0
    %v251 = vadd.f32 0.0, %v250
    %v252 = vpop.f32.mrf.mxu0
    %253 = vmatprep.mubr.bf16.mxu0 0
    %254 = vmatmul.mubr.bf16.gmra.mxu0 %v143
    %v255 = vpop.f32.mrf.mxu0
    %v256 = vadd.f32 0.0, %v255
    %v257 = vpop.f32.mrf.mxu0
    %v258 = vpop.f32.mrf.mxu0
    %v259 = vadd.f32 0.0, %v258
    %v260 = vpop.f32.mrf.mxu0
    %261 = vmatprep.mubr.bf16.mxu0 0
    %262 = vmatmul.mubr.bf16.gmra.mxu0 %v144
    %v263 = vpop.f32.mrf.mxu0
    %v264 = vadd.f32 0.0, %v263
    %v265 = vpop.f32.mrf.mxu0
    %v266 = vpop.f32.mrf.mxu0
    %v267 = vadd.f32 0.0, %v266
    %v268 = vpop.f32.mrf.mxu0
    %269 = vmatprep.mubr.bf16.mxu0 0
    %270 = vmatmul.mubr.bf16.gmra.mxu0 %v145
    %v271 = vpop.f32.mrf.mxu0
    %v272 = vadd.f32 0.0, %v271
    %v273 = vpop.f32.mrf.mxu0
    %v274 = vpop.f32.mrf.mxu0
    %v275 = vadd.f32 0.0, %v274
    %v276 = vpop.f32.mrf.mxu0
    %277 = vmatprep.mubr.bf16.mxu0 0
    %278 = vmatmul.mubr.bf16.gmra.mxu0 %v146
    %v279 = vpop.f32.mrf.mxu0
    %v280 = vadd.f32 0.0, %v279
    %v281 = vpop.f32.mrf.mxu0
    %v282 = vpop.f32.mrf.mxu0
    %v283 = vadd.f32 0.0, %v282
    %v284 = vpop.f32.mrf.mxu0
    %285 = vmatprep.mubr.bf16.mxu0 0
    %286 = vmatmul.mubr.bf16.gmra.mxu0 %v147
    %v287 = vpop.f32.mrf.mxu0
    %v288 = vadd.f32 0.0, %v287
    %v289 = vpop.f32.mrf.mxu0
    %v290 = vpop.f32.mrf.mxu0
    %v291 = vadd.f32 0.0, %v290
    %v292 = vpop.f32.mrf.mxu0
    %293 = vmatprep.mubr.bf16.mxu0 0
    %294 = vmatmul.mubr.bf16.gmra.mxu0 %v148
    %v295 = vpop.f32.mrf.mxu0
    %v296 = vadd.f32 0.0, %v295
    %v297 = vpop.f32.mrf.mxu0
    %v298 = vpop.f32.mrf.mxu0
    %v299 = vadd.f32 0.0, %v298
    %v300 = vpop.f32.mrf.mxu0
    %301 = vdwg.mxu0
    %v302 = vpack.c.bf16 %v243, %v240
    %v303 = vpack.c.bf16 %v251, %v248
    %v304 = vpack.c.bf16 %v259, %v256
    %v305 = vpack.c.bf16 %v267, %v264
    %v306 = vpack.c.bf16 %v275, %v272
    %v307 = vpack.c.bf16 %v283, %v280
    %v308 = vpack.c.bf16 %v291, %v288
    %v309 = vpack.c.bf16 %v299, %v296
    %v310 = vld [vmem:[%s4] sm:$0x1]
    %v312 = vlaneseq
    %v313 = vshrl.u32 %v312, 7
    %v314 = vsub.s32 0, %v313
    %v315 = vrot.slane %v310, %v314
    %v319 = vunpack.c.l.b16 %v107
    %v320 = vunpack.c.l.b16 %v108
    %v321 = vpack.c.b16 %v320, %v319
    %vm323 = vcmask 130048
    %v325 = vsel %vm323, %v302, 0
    %v328 = vsel %vm323, %v303, 0
    %v331 = vsel %vm323, %v304, 0
    %v334 = vsel %vm323, %v305, 0
    %v337 = vsel %vm323, %v306, 0
    %v340 = vsel %vm323, %v307, 0
    %v343 = vsel %vm323, %v308, 0
    %v346 = vsel %vm323, %v309, 0
    %348 = vmatprep.subr.bf16.mxu0 0
    %349 = vmatpush1.bf16.msra.mxu0 0
    %350 = vmatprep.subr.bf16.mxu0 0
    %351 = vmatpush1.bf16.msra.mxu0 0
    %352 = vmatprep.subr.bf16.mxu0 0
    %353 = vmatpush1.bf16.msra.mxu0 0
    %354 = vmatprep.subr.bf16.mxu0 0
    %355 = vmatpush1.bf16.msra.mxu0 0
    %356 = vmatprep.subr.bf16.mxu0 0
    %357 = vmatpush1.bf16.msra.mxu0 0
    %358 = vmatprep.subr.bf16.mxu0 0
    %359 = vmatpush1.bf16.msra.mxu0 0
    %360 = vmatprep.subr.bf16.mxu0 0
    %361 = vmatpush1.bf16.msra.mxu0 0
    %362 = vmatprep.subr.bf16.mxu0 0
    %363 = vmatpush1.bf16.msra.mxu0 %v321
    %364 = vmatprep.subr.bf16.mxu0 0
    %365 = vmatpush2.bf16.msra.mxu0 0
    %366 = vmatprep.subr.bf16.mxu0 0
    %367 = vmatpush2.bf16.msra.mxu0 0
    %368 = vmatprep.subr.bf16.mxu0 0
    %369 = vmatpush2.bf16.msra.mxu0 0
    %370 = vmatprep.subr.bf16.mxu0 0
    %371 = vmatpush2.bf16.msra.mxu0 0
    %372 = vmatprep.subr.bf16.mxu0 0
    %373 = vmatpush2.bf16.msra.mxu0 0
    %374 = vmatprep.subr.bf16.mxu0 0
    %375 = vmatpush2.bf16.msra.mxu0 0
    %376 = vmatprep.subr.bf16.mxu0 0
    %377 = vmatpush2.bf16.msra.mxu0 0
    %378 = vmatprep.subr.bf16.mxu0 0
    %379 = vmatpush2.bf16.msra.mxu0 0
    %380 = vmatprep.mubr.bf16.mxu0 0
    %381 = vmatmul.mubr.bf16.gmra.mxu0 %v325
    %v382 = vpop.f32.mrf.mxu0
    %v383 = vadd.f32 %v315, %v382
    %v384 = vpop.f32.mrf.mxu0
    %v385 = vpop.f32.mrf.mxu0
    %v386 = vadd.f32 %v315, %v385
    %v387 = vpop.f32.mrf.mxu0
    %388 = vmatprep.mubr.bf16.mxu0 0
    %389 = vmatmul.mubr.bf16.gmra.mxu0 %v328
    %v390 = vpop.f32.mrf.mxu0
    %v391 = vadd.f32 %v315, %v390
    %v392 = vpop.f32.mrf.mxu0
    %v393 = vpop.f32.mrf.mxu0
    %v394 = vadd.f32 %v315, %v393
    %v395 = vpop.f32.mrf.mxu0
    %396 = vmatprep.mubr.bf16.mxu0 0
    %397 = vmatmul.mubr.bf16.gmra.mxu0 %v331
    %v398 = vpop.f32.mrf.mxu0
    %v399 = vadd.f32 %v315, %v398
    %v400 = vpop.f32.mrf.mxu0
    %v401 = vpop.f32.mrf.mxu0
    %v402 = vadd.f32 %v315, %v401
    %v403 = vpop.f32.mrf.mxu0
    %404 = vmatprep.mubr.bf16.mxu0 0
    %405 = vmatmul.mubr.bf16.gmra.mxu0 %v334
    %v406 = vpop.f32.mrf.mxu0
    %v407 = vadd.f32 %v315, %v406
    %v408 = vpop.f32.mrf.mxu0
    %v409 = vpop.f32.mrf.mxu0
    %v410 = vadd.f32 %v315, %v409
    %v411 = vpop.f32.mrf.mxu0
    %412 = vmatprep.mubr.bf16.mxu0 0
    %413 = vmatmul.mubr.bf16.gmra.mxu0 %v337
    %v414 = vpop.f32.mrf.mxu0
    %v415 = vadd.f32 %v315, %v414
    %v416 = vpop.f32.mrf.mxu0
    %v417 = vpop.f32.mrf.mxu0
    %v418 = vadd.f32 %v315, %v417
    %v419 = vpop.f32.mrf.mxu0
    %420 = vmatprep.mubr.bf16.mxu0 0
    %421 = vmatmul.mubr.bf16.gmra.mxu0 %v340
    %v422 = vpop.f32.mrf.mxu0
    %v423 = vadd.f32 %v315, %v422
    %v424 = vpop.f32.mrf.mxu0
    %v425 = vpop.f32.mrf.mxu0
    %v426 = vadd.f32 %v315, %v425
    %v427 = vpop.f32.mrf.mxu0
    %428 = vmatprep.mubr.bf16.mxu0 0
    %429 = vmatmul.mubr.bf16.gmra.mxu0 %v343
    %v430 = vpop.f32.mrf.mxu0
    %v431 = vadd.f32 %v315, %v430
    %v432 = vpop.f32.mrf.mxu0
    %v433 = vpop.f32.mrf.mxu0
    %v434 = vadd.f32 %v315, %v433
    %v435 = vpop.f32.mrf.mxu0
    %436 = vmatprep.mubr.bf16.mxu0 0
    %437 = vmatmul.mubr.bf16.gmra.mxu0 %v346
    %v438 = vpop.f32.mrf.mxu0
    %v439 = vadd.f32 %v315, %v438
    %v440 = vpop.f32.mrf.mxu0
    %v441 = vpop.f32.mrf.mxu0
    %v442 = vadd.f32 %v315, %v441
    %v443 = vpop.f32.mrf.mxu0
    %444 = vdwg.mxu0
    %v445 = vmax.f32 %v383, 0.0
    %v446 = vmax.f32 %v386, 0.0
    %v447 = vmax.f32 %v391, 0.0
    %v448 = vmax.f32 %v394, 0.0
    %v449 = vmax.f32 %v399, 0.0
    %v450 = vmax.f32 %v402, 0.0
    %v451 = vmax.f32 %v407, 0.0
    %v452 = vmax.f32 %v410, 0.0
    %v453 = vmax.f32 %v415, 0.0
    %v454 = vmax.f32 %v418, 0.0
    %v455 = vmax.f32 %v423, 0.0
    %v456 = vmax.f32 %v426, 0.0
    %v457 = vmax.f32 %v431, 0.0
    %v458 = vmax.f32 %v434, 0.0
    %v459 = vmax.f32 %v439, 0.0
    %v460 = vmax.f32 %v442, 0.0
    %v461 = vpack.c.bf16 %v446, %v445
    %v462 = vpack.c.bf16 %v448, %v447
    %v463 = vpack.c.bf16 %v450, %v449
    %v464 = vpack.c.bf16 %v452, %v451
    %v465 = vpack.c.bf16 %v454, %v453
    %v466 = vpack.c.bf16 %v456, %v455
    %v467 = vpack.c.bf16 %v458, %v457
    %v468 = vpack.c.bf16 %v460, %v459
    %v469 = vld [vmem:[%s5] sm:$0xf]
    %v470 = vld [vmem:[%s5 + $0x4] sm:$0xf]
    %v471 = vld [vmem:[%s5 + $0x8] sm:$0xf]
    %v472 = vld [vmem:[%s5 + $0xc] sm:$0xf]
    %v473 = vld [vmem:[%s6] sm:$0x1]
    %v475 = vlaneseq
    %v476 = vshrl.u32 %v475, 7
    %v477 = vsub.s32 0, %v476
    %v478 = vrot.slane %v473, %v477
    %v484 = vunpack.c.l.b16 %v469
    %v485 = vunpack.c.l.b16 %v470
    %v486 = vunpack.c.l.b16 %v471
    %v487 = vunpack.c.l.b16 %v472
    %v488 = vpack.c.b16 %v485, %v484
    %v489 = vpack.c.b16 %v487, %v486
    %vm492 = vcmask 261120
    %v494 = vsel %vm492, %v461, 0
    %v497 = vsel %vm492, %v462, 0
    %v500 = vsel %vm492, %v463, 0
    %v503 = vsel %vm492, %v464, 0
    %v506 = vsel %vm492, %v465, 0
    %v509 = vsel %vm492, %v466, 0
    %v512 = vsel %vm492, %v467, 0
    %v515 = vsel %vm492, %v468, 0
    %517 = vmatprep.subr.bf16.mxu0 0
    %518 = vmatpush1.bf16.msra.mxu0 0
    %519 = vmatprep.subr.bf16.mxu0 0
    %520 = vmatpush1.bf16.msra.mxu0 0
    %521 = vmatprep.subr.bf16.mxu0 0
    %522 = vmatpush1.bf16.msra.mxu0 0
    %523 = vmatprep.subr.bf16.mxu0 0
    %524 = vmatpush1.bf16.msra.mxu0 0
    %525 = vmatprep.subr.bf16.mxu0 0
    %526 = vmatpush1.bf16.msra.mxu0 0
    %527 = vmatprep.subr.bf16.mxu0 0
    %528 = vmatpush1.bf16.msra.mxu0 0
    %529 = vmatprep.subr.bf16.mxu0 0
    %530 = vmatpush1.bf16.msra.mxu0 %v489
    %531 = vmatprep.subr.bf16.mxu0 0
    %532 = vmatpush1.bf16.msra.mxu0 %v488
    %533 = vmatprep.subr.bf16.mxu0 0
    %534 = vmatpush2.bf16.msra.mxu0 0
    %535 = vmatprep.subr.bf16.mxu0 0
    %536 = vmatpush2.bf16.msra.mxu0 0
    %537 = vmatprep.subr.bf16.mxu0 0
    %538 = vmatpush2.bf16.msra.mxu0 0
    %539 = vmatprep.subr.bf16.mxu0 0
    %540 = vmatpush2.bf16.msra.mxu0 0
    %541 = vmatprep.subr.bf16.mxu0 0
    %542 = vmatpush2.bf16.msra.mxu0 0
    %543 = vmatprep.subr.bf16.mxu0 0
    %544 = vmatpush2.bf16.msra.mxu0 0
    %545 = vmatprep.subr.bf16.mxu0 0
    %546 = vmatpush2.bf16.msra.mxu0 0
    %547 = vmatprep.subr.bf16.mxu0 0
    %548 = vmatpush2.bf16.msra.mxu0 0
    %549 = vmatprep.mubr.bf16.mxu0 0
    %550 = vmatmul.mubr.bf16.gmra.mxu0 %v494
    %v551 = vpop.f32.mrf.mxu0
    %v552 = vadd.f32 %v478, %v551
    %v553 = vpop.f32.mrf.mxu0
    %v554 = vpop.f32.mrf.mxu0
    %v555 = vadd.f32 %v478, %v554
    %v556 = vpop.f32.mrf.mxu0
    %557 = vmatprep.mubr.bf16.mxu0 0
    %558 = vmatmul.mubr.bf16.gmra.mxu0 %v497
    %v559 = vpop.f32.mrf.mxu0
    %v560 = vadd.f32 %v478, %v559
    %v561 = vpop.f32.mrf.mxu0
    %v562 = vpop.f32.mrf.mxu0
    %v563 = vadd.f32 %v478, %v562
    %v564 = vpop.f32.mrf.mxu0
    %565 = vmatprep.mubr.bf16.mxu0 0
    %566 = vmatmul.mubr.bf16.gmra.mxu0 %v500
    %v567 = vpop.f32.mrf.mxu0
    %v568 = vadd.f32 %v478, %v567
    %v569 = vpop.f32.mrf.mxu0
    %v570 = vpop.f32.mrf.mxu0
    %v571 = vadd.f32 %v478, %v570
    %v572 = vpop.f32.mrf.mxu0
    %573 = vmatprep.mubr.bf16.mxu0 0
    %574 = vmatmul.mubr.bf16.gmra.mxu0 %v503
    %v575 = vpop.f32.mrf.mxu0
    %v576 = vadd.f32 %v478, %v575
    %v577 = vpop.f32.mrf.mxu0
    %v578 = vpop.f32.mrf.mxu0
    %v579 = vadd.f32 %v478, %v578
    %v580 = vpop.f32.mrf.mxu0
    %581 = vmatprep.mubr.bf16.mxu0 0
    %582 = vmatmul.mubr.bf16.gmra.mxu0 %v506
    %v583 = vpop.f32.mrf.mxu0
    %v584 = vadd.f32 %v478, %v583
    %v585 = vpop.f32.mrf.mxu0
    %v586 = vpop.f32.mrf.mxu0
    %v587 = vadd.f32 %v478, %v586
    %v588 = vpop.f32.mrf.mxu0
    %589 = vmatprep.mubr.bf16.mxu0 0
    %590 = vmatmul.mubr.bf16.gmra.mxu0 %v509
    %v591 = vpop.f32.mrf.mxu0
    %v592 = vadd.f32 %v478, %v591
    %v593 = vpop.f32.mrf.mxu0
    %v594 = vpop.f32.mrf.mxu0
    %v595 = vadd.f32 %v478, %v594
    %v596 = vpop.f32.mrf.mxu0
    %597 = vmatprep.mubr.bf16.mxu0 0
    %598 = vmatmul.mubr.bf16.gmra.mxu0 %v512
    %v599 = vpop.f32.mrf.mxu0
    %v600 = vadd.f32 %v478, %v599
    %v601 = vpop.f32.mrf.mxu0
    %v602 = vpop.f32.mrf.mxu0
    %v603 = vadd.f32 %v478, %v602
    %v604 = vpop.f32.mrf.mxu0
    %605 = vmatprep.mubr.bf16.mxu0 0
    %606 = vmatmul.mubr.bf16.gmra.mxu0 %v515
    %v607 = vpop.f32.mrf.mxu0
    %v608 = vadd.f32 %v478, %v607
    %v609 = vpop.f32.mrf.mxu0
    %v610 = vpop.f32.mrf.mxu0
    %v611 = vadd.f32 %v478, %v610
    %v612 = vpop.f32.mrf.mxu0
    %613 = vdwg.mxu0
    %v614 = vmax.f32 %v552, 0.0
    %v615 = vmax.f32 %v555, 0.0
    %v616 = vmax.f32 %v560, 0.0
    %v617 = vmax.f32 %v563, 0.0
    %v618 = vmax.f32 %v568, 0.0
    %v619 = vmax.f32 %v571, 0.0
    %v620 = vmax.f32 %v576, 0.0
    %v621 = vmax.f32 %v579, 0.0
    %v622 = vmax.f32 %v584, 0.0
    %v623 = vmax.f32 %v587, 0.0
    %v624 = vmax.f32 %v592, 0.0
    %v625 = vmax.f32 %v595, 0.0
    %v626 = vmax.f32 %v600, 0.0
    %v627 = vmax.f32 %v603, 0.0
    %v628 = vmax.f32 %v608, 0.0
    %v629 = vmax.f32 %v611, 0.0
    %v630 = vld [vmem:[#allocation2] sm:$0xf]
    %v631 = vld [vmem:[#allocation2 + $0x4] sm:$0xf]
    %v632 = vpack.c.bf16 %v615, %v614
    %v633 = vpack.c.bf16 %v617, %v616
    %v634 = vpack.c.bf16 %v619, %v618
    %v635 = vpack.c.bf16 %v621, %v620
    %v636 = vpack.c.bf16 %v623, %v622
    %v637 = vpack.c.bf16 %v625, %v624
    %v638 = vpack.c.bf16 %v627, %v626
    %v639 = vpack.c.bf16 %v629, %v628
    %v642 = vunpack.c.l.b16 %v630
    %v643 = vunpack.c.l.b16 %v631
    %v644 = vpack.c.b16 %v643, %v642
    %646 = vmatprep.subr.bf16.mxu0 0
    %647 = vmatpush1.bf16.msra.mxu0 %v639
    %648 = vmatprep.subr.bf16.mxu0 0
    %649 = vmatpush1.bf16.msra.mxu0 %v638
    %650 = vmatprep.subr.bf16.mxu0 0
    %651 = vmatpush1.bf16.msra.mxu0 %v637
    %652 = vmatprep.subr.bf16.mxu0 0
    %653 = vmatpush1.bf16.msra.mxu0 %v636
    %654 = vmatprep.subr.bf16.mxu0 0
    %655 = vmatpush1.bf16.msra.mxu0 %v635
    %656 = vmatprep.subr.bf16.mxu0 0
    %657 = vmatpush1.bf16.msra.mxu0 %v634
    %658 = vmatprep.subr.bf16.mxu0 0
    %659 = vmatpush1.bf16.msra.mxu0 %v633
    %660 = vmatprep.subr.bf16.mxu0 0
    %661 = vmatpush1.bf16.msra.mxu0 %v632
    %662 = vmatprep.subr.bf16.mxu0 0
    %663 = vmatpush2.bf16.msra.mxu0 0
    %664 = vmatprep.subr.bf16.mxu0 0
    %665 = vmatpush2.bf16.msra.mxu0 0
    %666 = vmatprep.subr.bf16.mxu0 0
    %667 = vmatpush2.bf16.msra.mxu0 0
    %668 = vmatprep.subr.bf16.mxu0 0
    %669 = vmatpush2.bf16.msra.mxu0 0
    %670 = vmatprep.subr.bf16.mxu0 0
    %671 = vmatpush2.bf16.msra.mxu0 0
    %672 = vmatprep.subr.bf16.mxu0 0
    %673 = vmatpush2.bf16.msra.mxu0 0
    %674 = vmatprep.subr.bf16.mxu0 0
    %675 = vmatpush2.bf16.msra.mxu0 0
    %676 = vmatprep.subr.bf16.mxu0 0
    %677 = vmatpush2.bf16.msra.mxu0 0
    %678 = vmatprep.mubr.bf16.mxu0 0
    %679 = vmatmul.mubr.bf16.gmra.mxu0 %v644
    %v680 = vpop.f32.mrf.mxu0
    %v681 = vadd.f32 0.0, %v680
    %v682 = vpop.f32.mrf.mxu0
    %v683 = vpop.f32.mrf.mxu0
    %v684 = vadd.f32 0.0, %v683
    %v685 = vpop.f32.mrf.mxu0
    %686 = vdwg.mxu0
    %v687 = vpack.c.bf16 %v684, %v681
    %v688 = vld [vmem:[#allocation7] sm:$0xf]
    %v689 = vld [vmem:[#allocation7 + $0x4] sm:$0xf]
    %v690 = vld [vmem:[#allocation7 + $0x8] sm:$0xf]
    %v691 = vld [vmem:[#allocation7 + $0xc] sm:$0xf]
    %v692 = vld [vmem:[%s8] sm:$0x1]
    %v694 = vlaneseq
    %v695 = vshrl.u32 %v694, 7
    %v696 = vsub.s32 0, %v695
    %v697 = vrot.slane %v692, %v696
    %v703 = vunpack.c.l.b16 %v688
    %v704 = vunpack.c.l.b16 %v689
    %v705 = vunpack.c.l.b16 %v690
    %v706 = vunpack.c.l.b16 %v691
    %v707 = vpack.c.b16 %v704, %v703
    %v708 = vpack.c.b16 %v706, %v705
    %v712 = vsel %vm492, %v687, 0
    %714 = vmatprep.subr.bf16.mxu0 0
    %715 = vmatpush1.bf16.msra.mxu0 0
    %716 = vmatprep.subr.bf16.mxu0 0
    %717 = vmatpush1.bf16.msra.mxu0 0
    %718 = vmatprep.subr.bf16.mxu0 0
    %719 = vmatpush1.bf16.msra.mxu0 0
    %720 = vmatprep.subr.bf16.mxu0 0
    %721 = vmatpush1.bf16.msra.mxu0 0
    %722 = vmatprep.subr.bf16.mxu0 0
    %723 = vmatpush1.bf16.msra.mxu0 0
    %724 = vmatprep.subr.bf16.mxu0 0
    %725 = vmatpush1.bf16.msra.mxu0 0
    %726 = vmatprep.subr.bf16.mxu0 0
    %727 = vmatpush1.bf16.msra.mxu0 %v708
    %728 = vmatprep.subr.bf16.mxu0 0
    %729 = vmatpush1.bf16.msra.mxu0 %v707
    %730 = vmatprep.subr.bf16.mxu0 0
    %731 = vmatpush2.bf16.msra.mxu0 0
    %732 = vmatprep.subr.bf16.mxu0 0
    %733 = vmatpush2.bf16.msra.mxu0 0
    %734 = vmatprep.subr.bf16.mxu0 0
    %735 = vmatpush2.bf16.msra.mxu0 0
    %736 = vmatprep.subr.bf16.mxu0 0
    %737 = vmatpush2.bf16.msra.mxu0 0
    %738 = vmatprep.subr.bf16.mxu0 0
    %739 = vmatpush2.bf16.msra.mxu0 0
    %740 = vmatprep.subr.bf16.mxu0 0
    %741 = vmatpush2.bf16.msra.mxu0 0
    %742 = vmatprep.subr.bf16.mxu0 0
    %743 = vmatpush2.bf16.msra.mxu0 0
    %744 = vmatprep.subr.bf16.mxu0 0
    %745 = vmatpush2.bf16.msra.mxu0 0
    %746 = vmatprep.mubr.bf16.mxu0 0
    %747 = vmatmul.mubr.bf16.gmra.mxu0 %v712
    %v748 = vpop.f32.mrf.mxu0
    %v749 = vadd.f32 %v697, %v748
    %v750 = vpop.f32.mrf.mxu0
    %v751 = vpop.f32.mrf.mxu0
    %v752 = vadd.f32 %v697, %v751
    %v753 = vpop.f32.mrf.mxu0
    %754 = vdwg.mxu0
    %755 = vst [vmem:[#allocation8] sm:$0xff] %v749
    %756 = vst [vmem:[#allocation8 + $0x8] sm:$0xff] %v752
    // Predicated region
    $region50: #{tpu_custom_call.1} parent=1 // pred_check
      _
    $region51: #{tpu_custom_call.1} parent=1 // pred_check_branch
      %758 = sbr.rel (0) target = $region53
    $region52: #{tpu_custom_call.1} parent=1 // pred_region
      %s760 = ssub.s32 256, 256
      %761 = vsyncadd [#allocation4], %s760
      %s762 = sshll.u32 [#allocation8], 4
      %s763 = int_to_ptr.vmem [resolvable:$true] %s762
      %768 = dma.vmem_to_hbm [thread:$0]  %s763, 256, %s9, [#allocation4], 128, 128, 8
    $region53: #{tpu_custom_call.1} parent=1 // pred_fallthru
      _
    // Predicated region
    $region54: #{tpu_custom_call.1} parent=1 // pred_check
      _
    $region55: #{tpu_custom_call.1} parent=1 // pred_check_branch
      %770 = sbr.rel (0) target = $region57
    $region56: #{tpu_custom_call.1} parent=1 // pred_region
      %771 = dma.done [#allocation4], 256
    $region57: #{tpu_custom_call.1} parent=1 // pred_fallthru
      _
    %772 = vsyncpa [#allocation3], 1
    %773 = vsyncpa [#allocation6], 1
    %774 = vsyncpa [#allocation4], 1

</llo_original>
